<compile_context>
chip_gen: v7x
topology: tpu7x:2x2x1
jax: 0.10.0
libtpu: 0.0.40
codegen_flags: <defaults>
</compile_context>

<pallas_src>
import jax
import jax.numpy as jnp
from jax.experimental import pallas as pl
from jax.experimental.pallas import tpu as pltpu

HIDDEN = 100        # logical hidden width of fcs1..fcs3 (PyTorch)
H_PAD = 128         # hidden padded to one full lane tile
WIDE = 1000         # logical fcs4 / fca output width
WIDE_PAD = 1024     # padded to 8 clean lane tiles
OUT_LANES = 128     # lane-dense output block; column 0 holds the real result


def _leaky_relu(v):
    # F.leaky_relu default negative_slope = 0.01
    return jnp.where(v > 0, v, 0.01 * v)


def _round_up(x, m):
    return (x + m - 1) // m * m


def cnet_kernel(xs_ref, aemb_ref,
                w1_ref, b1_ref,
                w2_ref, b2_ref,
                w3_ref, b3_ref,
                w4a_ref, b4a_ref,
                wo_ref, bo_ref,
                out_ref):
    # Activations arrive in f32; cast to bf16 only at MXU inputs.
    xs = xs_ref[...].astype(jnp.bfloat16)                                  # (1, s_dim)

    # --- state branch (M = 1): bf16 MXU dots, f32 bias/leaky_relu
    h = jnp.dot(xs, w1_ref[...], preferred_element_type=jnp.float32) + b1_ref[...]
    h = _leaky_relu(h).astype(jnp.bfloat16)                                # (1, H_PAD)
    h = jnp.dot(h, w2_ref[...], preferred_element_type=jnp.float32) + b2_ref[...]
    h = _leaky_relu(h).astype(jnp.bfloat16)                                # (1, H_PAD)
    h = jnp.dot(h, w3_ref[...], preferred_element_type=jnp.float32) + b3_ref[...]
    h = _leaky_relu(h)                                                     # (1, K_PAD) f32
    # lanes >= HIDDEN of h are exactly 0 (zero-padded w3 cols / b3, leaky(0)=0)

    # --- fused fcs4 + fca: action already lives in the zero lanes of h's tail,
    # so a single dot against the packed rhs computes fcs4(h) + fca(a).
    lhs = (h + aemb_ref[...]).astype(jnp.bfloat16)                         # (B, K_PAD)
    net = jnp.dot(lhs, w4a_ref[...],
                  preferred_element_type=jnp.float32) + b4a_ref[...]       # (B, WIDE_PAD)
    net = _leaky_relu(net)                                                 # f32

    # --- final 1000 -> 1 projection as lane-contiguous multiply + reduce
    # (padded columns of wo are zero -> no contribution).
    val = jnp.sum(net * wo_ref[...], axis=-1, keepdims=True) + bo_ref[...]  # (B, 1)

    # lane-dense store: broadcast the per-row scalar across 128 lanes
    out_ref[...] = jnp.broadcast_to(val, out_ref.shape)


def init_cnet_params(key, s_dim, a_dim):
    """Init matching the PyTorch module, then repack ONCE into kernel layout:
    weights (in, out) bf16, hidden padded 100 -> 128, WIDE padded 1000 -> 1024,
    fcs4/fca packed into a single fused rhs + prefolded bias. Returns
    (kernel_params, raw_f32_params)."""
    a_in = 2 * a_dim
    k_pad = max(H_PAD, _round_up(HIDDEN + a_in, 128))   # fused contraction width
    a_off = k_pad - a_in                                # >= HIDDEN by construction

    ks = jax.random.split(key, 12)

    def lin(kw, kb, out_f, in_f, w_mean, w_std):
        # PyTorch convention: weight (out, in), bias ~ U(-1/sqrt(in), 1/sqrt(in))
        w = w_mean + w_std * jax.random.normal(kw, (out_f, in_f), jnp.float32)
        bound = float(in_f) ** -0.5
        b = jax.random.uniform(kb, (out_f,), jnp.float32, -bound, bound)
        return w, b

    fcs1_w, fcs1_b = lin(ks[0], ks[1], HIDDEN, s_dim, 0.1, 0.02)
    fcs2_w, fcs2_b = lin(ks[2], ks[3], HIDDEN, HIDDEN, 0.1, 0.02)
    fcs3_w, fcs3_b = lin(ks[4], ks[5], HIDDEN, HIDDEN, 0.1, 0.02)
    fcs4_w, fcs4_b = lin(ks[6], ks[7], WIDE, HIDDEN, 0.1, 0.02)
    fca_w, fca_b = lin(ks[8], ks[9], WIDE, a_in, 0.1, 0.02)
    out_w, out_b = lin(ks[10], ks[11], 1, WIDE, 0.0, 0.1)

    def prep_w(w, in_pad, out_pad):
        # (out, in) -> (in_pad, out_pad), zero padded, bf16. Padding is inert.
        wt = jnp.transpose(w).astype(jnp.bfloat16)
        i, o = wt.shape
        return jnp.pad(wt, ((0, in_pad - i), (0, out_pad - o)))

    def prep_b(b, out_pad):
        return jnp.pad(b, (0, out_pad - b.shape[0])).reshape(1, -1).astype(jnp.float32)

    # Fused fcs4+fca rhs: rows [0, HIDDEN) carry W4^T, rows [a_off, a_off+a_in)
    # carry Wa^T; everything else (incl. columns >= WIDE) is zero.
    w4a = jnp.zeros((k_pad, WIDE_PAD), jnp.bfloat16)
    w4a = w4a.at[:HIDDEN, :WIDE].set(jnp.transpose(fcs4_w).astype(jnp.bfloat16))
    w4a = w4a.at[a_off:a_off + a_in, :WIDE].set(jnp.transpose(fca_w).astype(jnp.bfloat16))
    b4a = prep_b(fcs4_b + fca_b, WIDE_PAD)

    kernel_params = {
        "w1": prep_w(fcs1_w, s_dim, H_PAD), "b1": prep_b(fcs1_b, H_PAD),
        "w2": prep_w(fcs2_w, H_PAD, H_PAD), "b2": prep_b(fcs2_b, H_PAD),
        "w3": prep_w(fcs3_w, H_PAD, k_pad), "b3": prep_b(fcs3_b, k_pad),
        "w4a": w4a, "b4a": b4a,
        # output layer kept f32 in native row layout for the multiply+reduce
        "wo": jnp.pad(out_w, ((0, 0), (0, WIDE_PAD - WIDE))).astype(jnp.float32),
        "bo": out_b.reshape(1, 1).astype(jnp.float32),
        "k_pad": k_pad, "a_off": a_off, "a_in": a_in,
    }
    raw_params = {
        "fcs1_w": fcs1_w, "fcs1_b": fcs1_b, "fcs2_w": fcs2_w, "fcs2_b": fcs2_b,
        "fcs3_w": fcs3_w, "fcs3_b": fcs3_b, "fcs4_w": fcs4_w, "fcs4_b": fcs4_b,
        "fca_w": fca_w, "fca_b": fca_b, "out_w": out_w, "out_b": out_b,
    }
    return kernel_params, raw_params


def cnet_forward(kp, s, a):
    """Pallas-backed CNet.forward(s, a).

    s: (D0, D1, D2, s_dim) with D1 >= 10 (forward uses s[0][9][0])
    a: (B, 2*a_dim)
    returns: (B, 1) float32
    """
    B, a_in = a.shape
    assert a_in == kp["a_in"], (a_in, kp["a_in"])
    k_pad, a_off = kp["k_pad"], kp["a_off"]

    # Tiny per-call prep only: slice the state row (f32) and embed the action
    # into the zero lanes of the fcs3 output. All dtype casts happen in-kernel.
    x_s = s[0, 9, 0].reshape(1, -1)                                   # (1, s_dim) f32
    a_emb = jnp.pad(a, ((0, 0), (a_off, k_pad - a_off - a_in)))       # (B, k_pad) f32

    args = (x_s, a_emb,
            kp["w1"], kp["b1"], kp["w2"], kp["b2"], kp["w3"], kp["b3"],
            kp["w4a"], kp["b4a"], kp["wo"], kp["bo"])

    s_dim = x_s.shape[1]
    flops = 2 * (s_dim * H_PAD            # fcs1 (M=1)
                 + H_PAD * H_PAD          # fcs2 (M=1)
                 + H_PAD * k_pad          # fcs3 (M=1)
                 + B * k_pad * WIDE_PAD   # fused fcs4+fca
                 + B * WIDE_PAD)          # final multiply+reduce
    bytes_accessed = int(sum(int(x.size) * x.dtype.itemsize for x in args)
                         + B * OUT_LANES * 4)

    vmem = pl.BlockSpec(memory_space=pltpu.MemorySpace.VMEM)
    padded = pl.pallas_call(
        cnet_kernel,
        out_shape=jax.ShapeDtypeStruct((B, OUT_LANES), jnp.float32),
        in_specs=[vmem] * len(args),
        out_specs=vmem,
        cost_estimate=pl.CostEstimate(flops=flops, transcendentals=0,
                                      bytes_accessed=bytes_accessed),
    )(*args)
    # column 0 carries the result; the rest is the lane-dense broadcast pad
    return padded[:, :1]


def cnet_forward_ref(raw, s, a):
    """Pure-JAX reference following the original module structure, with the
    same numerics as the kernel (bf16 MXU operands, f32 accumulation &
    elementwise). Validates the fused/padded packing."""
    lr = _leaky_relu

    def lin_bf16(x, w, b):
        return jnp.dot(x.astype(jnp.bfloat16),
                       jnp.transpose(w).astype(jnp.bfloat16),
                       preferred_element_type=jnp.float32) + b

    x = s[0, 9, 0].reshape(1, -1)
    h = lr(lin_bf16(x, raw["fcs1_w"], raw["fcs1_b"]))
    h = lr(lin_bf16(h, raw["fcs2_w"], raw["fcs2_b"]))
    h = lr(lin_bf16(h, raw["fcs3_w"], raw["fcs3_b"]))
    x4 = lin_bf16(h, raw["fcs4_w"], raw["fcs4_b"])
    y = lin_bf16(a, raw["fca_w"], raw["fca_b"])
    net = lr(x4 + y)
    return jnp.dot(net, jnp.transpose(raw["out_w"])) + raw["out_b"]   # f32 final


if __name__ == "__main__":
    s_dim = 16
    a_dim = 4
    B = 2

    key = jax.random.PRNGKey(0)
    k_s, k_a, k_p = jax.random.split(key, 3)

    # s must support s[0][9][0] -> (s_dim,) vector, so dim1 >= 10
    s = jax.random.normal(k_s, (2, 10, 3, s_dim), jnp.float32)
    a = jax.random.normal(k_a, (B, 2 * a_dim), jnp.float32)
    kp, raw = init_cnet_params(k_p, s_dim, a_dim)

    out = jax.block_until_ready(cnet_forward(kp, s, a))
    ref = jax.block_until_ready(cnet_forward_ref(raw, s, a))

    assert out.shape == (B, 1), out.shape
    assert jnp.allclose(out, ref, rtol=5e-3, atol=5e-2), (out, ref)

    print("KERNEL_OK")
</pallas_src>

<mosaic_0001>
module attributes {stable_mosaic.version = 11 : i64} {
  func.func @cnet_kernel(%arg0: memref<1x16xf32, #tpu.memory_space<vmem>>, %arg1: memref<2x128xf32, #tpu.memory_space<vmem>>, %arg2: memref<16x128xbf16, #tpu.memory_space<vmem>>, %arg3: memref<1x128xf32, #tpu.memory_space<vmem>>, %arg4: memref<128x128xbf16, #tpu.memory_space<vmem>>, %arg5: memref<1x128xf32, #tpu.memory_space<vmem>>, %arg6: memref<128x128xbf16, #tpu.memory_space<vmem>>, %arg7: memref<1x128xf32, #tpu.memory_space<vmem>>, %arg8: memref<128x1024xbf16, #tpu.memory_space<vmem>>, %arg9: memref<1x1024xf32, #tpu.memory_space<vmem>>, %arg10: memref<1x1024xf32, #tpu.memory_space<vmem>>, %arg11: memref<1x1xf32, #tpu.memory_space<vmem>>, %arg12: memref<2x128xf32, #tpu.memory_space<vmem>>) attributes {dimension_semantics = [], scalar_prefetch = 0 : i64, scratch_operands = 0 : i64, tpu.core_type = #tpu.core_type<tc>} {
    %c0 = arith.constant 0 : index
    %c0_0 = arith.constant 0 : index
    %0 = vector.load %arg0[%c0, %c0_0] : memref<1x16xf32, #tpu.memory_space<vmem>>, vector<1x16xf32>
    %1 = arith.truncf %0 : vector<1x16xf32> to vector<1x16xbf16>
    %c0_1 = arith.constant 0 : index
    %c0_2 = arith.constant 0 : index
    %2 = vector.load %arg2[%c0_1, %c0_2] : memref<16x128xbf16, #tpu.memory_space<vmem>>, vector<16x128xbf16>
    %cst = arith.constant dense<0.000000e+00> : vector<1x128xf32>
    %3 = tpu.matmul %1, %2, %cst {dimension_numbers = #tpu.dot_dimension_numbers<[1], [0], [0], [1], [0, 0, 1, 1], [], []>} : vector<1x16xbf16>, vector<16x128xbf16>, vector<1x128xf32> -> vector<1x128xf32>
    %c0_3 = arith.constant 0 : index
    %c0_4 = arith.constant 0 : index
    %4 = vector.load %arg3[%c0_3, %c0_4] : memref<1x128xf32, #tpu.memory_space<vmem>>, vector<1x128xf32>
    %5 = arith.addf %3, %4 : vector<1x128xf32>
    %cst_5 = arith.constant 0.000000e+00 : f32
    %6 = vector.broadcast %cst_5 : f32 to vector<1x128xf32>
    %7 = arith.cmpf ogt, %5, %6 : vector<1x128xf32>
    %cst_6 = arith.constant 0.00999999977 : f32
    %8 = vector.broadcast %cst_6 : f32 to vector<1x128xf32>
    %9 = arith.mulf %8, %5 : vector<1x128xf32>
    %10 = arith.select %7, %5, %9 : vector<1x128xi1>, vector<1x128xf32>
    %11 = arith.truncf %10 : vector<1x128xf32> to vector<1x128xbf16>
    %c0_7 = arith.constant 0 : index
    %c0_8 = arith.constant 0 : index
    %12 = vector.load %arg4[%c0_7, %c0_8] : memref<128x128xbf16, #tpu.memory_space<vmem>>, vector<128x128xbf16>
    %cst_9 = arith.constant dense<0.000000e+00> : vector<1x128xf32>
    %13 = tpu.matmul %11, %12, %cst_9 {dimension_numbers = #tpu.dot_dimension_numbers<[1], [0], [0], [1], [0, 0, 1, 1], [], []>} : vector<1x128xbf16>, vector<128x128xbf16>, vector<1x128xf32> -> vector<1x128xf32>
    %c0_10 = arith.constant 0 : index
    %c0_11 = arith.constant 0 : index
    %14 = vector.load %arg5[%c0_10, %c0_11] : memref<1x128xf32, #tpu.memory_space<vmem>>, vector<1x128xf32>
    %15 = arith.addf %13, %14 : vector<1x128xf32>
    %cst_12 = arith.constant 0.000000e+00 : f32
    %16 = vector.broadcast %cst_12 : f32 to vector<1x128xf32>
    %17 = arith.cmpf ogt, %15, %16 : vector<1x128xf32>
    %cst_13 = arith.constant 0.00999999977 : f32
    %18 = vector.broadcast %cst_13 : f32 to vector<1x128xf32>
    %19 = arith.mulf %18, %15 : vector<1x128xf32>
    %20 = arith.select %17, %15, %19 : vector<1x128xi1>, vector<1x128xf32>
    %21 = arith.truncf %20 : vector<1x128xf32> to vector<1x128xbf16>
    %c0_14 = arith.constant 0 : index
    %c0_15 = arith.constant 0 : index
    %22 = vector.load %arg6[%c0_14, %c0_15] : memref<128x128xbf16, #tpu.memory_space<vmem>>, vector<128x128xbf16>
    %cst_16 = arith.constant dense<0.000000e+00> : vector<1x128xf32>
    %23 = tpu.matmul %21, %22, %cst_16 {dimension_numbers = #tpu.dot_dimension_numbers<[1], [0], [0], [1], [0, 0, 1, 1], [], []>} : vector<1x128xbf16>, vector<128x128xbf16>, vector<1x128xf32> -> vector<1x128xf32>
    %c0_17 = arith.constant 0 : index
    %c0_18 = arith.constant 0 : index
    %24 = vector.load %arg7[%c0_17, %c0_18] : memref<1x128xf32, #tpu.memory_space<vmem>>, vector<1x128xf32>
    %25 = arith.addf %23, %24 : vector<1x128xf32>
    %cst_19 = arith.constant 0.000000e+00 : f32
    %26 = vector.broadcast %cst_19 : f32 to vector<1x128xf32>
    %27 = arith.cmpf ogt, %25, %26 : vector<1x128xf32>
    %cst_20 = arith.constant 0.00999999977 : f32
    %28 = vector.broadcast %cst_20 : f32 to vector<1x128xf32>
    %29 = arith.mulf %28, %25 : vector<1x128xf32>
    %30 = arith.select %27, %25, %29 : vector<1x128xi1>, vector<1x128xf32>
    %c0_21 = arith.constant 0 : index
    %c0_22 = arith.constant 0 : index
    %31 = vector.load %arg1[%c0_21, %c0_22] : memref<2x128xf32, #tpu.memory_space<vmem>>, vector<2x128xf32>
    %32 = vector.broadcast %30 : vector<1x128xf32> to vector<2x128xf32>
    %33 = arith.addf %32, %31 : vector<2x128xf32>
    %34 = arith.truncf %33 : vector<2x128xf32> to vector<2x128xbf16>
    %c0_23 = arith.constant 0 : index
    %c0_24 = arith.constant 0 : index
    %35 = vector.load %arg8[%c0_23, %c0_24] : memref<128x1024xbf16, #tpu.memory_space<vmem>>, vector<128x1024xbf16>
    %cst_25 = arith.constant dense<0.000000e+00> : vector<2x1024xf32>
    %36 = tpu.matmul %34, %35, %cst_25 {dimension_numbers = #tpu.dot_dimension_numbers<[1], [0], [0], [1], [0, 0, 1, 1], [], []>} : vector<2x128xbf16>, vector<128x1024xbf16>, vector<2x1024xf32> -> vector<2x1024xf32>
    %c0_26 = arith.constant 0 : index
    %c0_27 = arith.constant 0 : index
    %37 = vector.load %arg9[%c0_26, %c0_27] : memref<1x1024xf32, #tpu.memory_space<vmem>>, vector<1x1024xf32>
    %38 = vector.broadcast %37 : vector<1x1024xf32> to vector<2x1024xf32>
    %39 = arith.addf %36, %38 : vector<2x1024xf32>
    %cst_28 = arith.constant 0.000000e+00 : f32
    %40 = vector.broadcast %cst_28 : f32 to vector<2x1024xf32>
    %41 = arith.cmpf ogt, %39, %40 : vector<2x1024xf32>
    %cst_29 = arith.constant 0.00999999977 : f32
    %42 = vector.broadcast %cst_29 : f32 to vector<2x1024xf32>
    %43 = arith.mulf %42, %39 : vector<2x1024xf32>
    %44 = arith.select %41, %39, %43 : vector<2x1024xi1>, vector<2x1024xf32>
    %c0_30 = arith.constant 0 : index
    %c0_31 = arith.constant 0 : index
    %45 = vector.load %arg10[%c0_30, %c0_31] : memref<1x1024xf32, #tpu.memory_space<vmem>>, vector<1x1024xf32>
    %46 = vector.broadcast %45 : vector<1x1024xf32> to vector<2x1024xf32>
    %47 = arith.mulf %44, %46 : vector<2x1024xf32>
    %cst_32 = arith.constant dense<0.000000e+00> : vector<2xf32>
    %48 = vector.multi_reduction <add>, %47, %cst_32 [1] : vector<2x1024xf32> to vector<2xf32>
    %49 = vector.shape_cast %48 : vector<2xf32> to vector<2x1xf32>
    %c0_33 = arith.constant 0 : index
    %c0_34 = arith.constant 0 : index
    %50 = vector.load %arg11[%c0_33, %c0_34] : memref<1x1xf32, #tpu.memory_space<vmem>>, vector<1x1xf32>
    %51 = vector.broadcast %50 : vector<1x1xf32> to vector<2x1xf32>
    %52 = arith.addf %49, %51 : vector<2x1xf32>
    %53 = vector.shape_cast %52 : vector<2x1xf32> to vector<2x1xf32>
    %54 = vector.broadcast %53 : vector<2x1xf32> to vector<2x128xf32>
    %c0_35 = arith.constant 0 : index
    %c0_36 = arith.constant 0 : index
    %55 = vector.load %arg12[%c0_35, %c0_36] : memref<2x128xf32, #tpu.memory_space<vmem>>, vector<2x128xf32>
    tpu.vector_store %arg12[%c0_35, %c0_36], %54 {strides = array<i32>} : memref<2x128xf32, #tpu.memory_space<vmem>>, vector<2x128xf32>,
    return
  }
}

</mosaic_0001>

<llo_original>
// kernel: tpu_custom_call.1
$region0: #{tpu_custom_call.1}
  #allocation0 [shape = 'u32[]', space=smem, size = 0x4, offset = 0x4, fixed_abs, tag = 'smem constant byte address 0x4 - core index']
  #allocation1 [shape = 'u32[144,128]{1,0:T(1,128)}', space=vmem, size = 0x12000, scoped, tag = 'internal scratch']
  #allocation2 [shape = 'f32[1,1]{1,0:T(1,128)S(1)}', space=vmem, size = 0x200, scoped, tag = 'scoped memory for tpu_custom_call.1']
  %s0 = inlined_call_operand.hbm [shape: f32[1,16], index: 0, kind: input, shape index: {}]
  %s1 = inlined_call_operand.vmem [shape: f32[2,128], index: 1, kind: input, shape index: {}]
  %s2 = inlined_call_operand.vmem [shape: bf16[16,128], index: 2, kind: input, shape index: {}]
  %s3 = inlined_call_operand.hbm [shape: f32[1,128], index: 3, kind: input, shape index: {}]
  %s4 = inlined_call_operand.hbm [shape: bf16[128,128], index: 4, kind: input, shape index: {}]
  %s5 = inlined_call_operand.hbm [shape: f32[1,128], index: 5, kind: input, shape index: {}]
  %s6 = inlined_call_operand.hbm [shape: bf16[128,128], index: 6, kind: input, shape index: {}]
  %s7 = inlined_call_operand.vmem [shape: f32[1,128], index: 7, kind: input, shape index: {}]
  %s8 = inlined_call_operand.hbm [shape: bf16[128,1024], index: 8, kind: input, shape index: {}]
  %s9 = inlined_call_operand.vmem [shape: f32[1,1024], index: 9, kind: input, shape index: {}]
  %s10 = inlined_call_operand.vmem [shape: f32[1,1024], index: 10, kind: input, shape index: {}]
  %s11 = inlined_call_operand.<no memory space> [shape: f32[1,1], index: 11, kind: input, shape index: {}]
  %s12 = inlined_call_operand.hbm [shape: f32[2,128], index: 12, kind: output, shape index: {}]
  %s13 = sld [smem:[#allocation0]]
  $region82: #{tpu_custom_call.1} parent=0
    _
  %s15 = ssub.s32 1, %s13
  %s16 = scalar_select 0, %s15, %s13
  %v17 = vstv %s11
  %18 = vst [vmem:[#allocation2] sm:$0x1] %v17
  $region1: #{tpu_custom_call.1} parent=0
    #allocation3 [shape = 'u8[512]{0}', space=vmem, size = 0x400, scoped, tag = 'input window, operand 0, single buffered']
    #allocation4 [shape = 's32[1]{0}', space=sflag, size = 0x4, scoped, tag = 'scoped memory for tpu_custom_call.1']
    #allocation5 [shape = 's32[1]{0}', space=sflag, size = 0x4, scoped, tag = 'scoped memory for tpu_custom_call.1']
    #allocation6 [shape = 'u8[512]{0}', space=vmem, size = 0x400, scoped, tag = 'input window, operand 3, single buffered']
    #allocation7 [shape = 's32[1]{0}', space=sflag, size = 0x4, scoped, tag = 'scoped memory for tpu_custom_call.1']
    #allocation8 [shape = 'u8[32768]{0}', space=vmem, size = 0x8000, scoped, tag = 'input window, operand 4, single buffered']
    #allocation9 [shape = 'u8[512]{0}', space=vmem, size = 0x400, scoped, tag = 'input window, operand 5, single buffered']
    #allocation10 [shape = 's32[1]{0}', space=sflag, size = 0x4, scoped, tag = 'scoped memory for tpu_custom_call.1']
    #allocation11 [shape = 'u8[32768]{0}', space=vmem, size = 0x8000, scoped, tag = 'input window, operand 6, single buffered']
    #allocation12 [shape = 'u8[262144]{0}', space=vmem, size = 0x40000, scoped, tag = 'input window, operand 8, single buffered']
    #allocation13 [shape = 's32[1]{0}', space=sflag, size = 0x4, scoped, tag = 'scoped memory for tpu_custom_call.1']
    #allocation14 [shape = 'u8[1024]{0}', space=vmem, size = 0x400, scoped, tag = 'output window, operand 0, single buffered']
    %19 = vsyncpa [#allocation4], 0
    %20 = vsyncpa [#allocation7], 0
    %21 = vsyncpa [#allocation10], 0
    %22 = vsyncpa [#allocation13], 0
    %23 = vsyncpa [#allocation5], 0
    // Predicated region
    $region2: #{tpu_custom_call.1} parent=1 // pred_check
      _
    $region3: #{tpu_custom_call.1} parent=1 // pred_check_branch
      %25 = sbr.rel (0) target = $region5
    $region4: #{tpu_custom_call.1} parent=1 // pred_region
      %s27 = ssub.s32 16, 16
      %28 = vsyncadd [#allocation4], %s27
      %s30 = sshll.u32 [#allocation3], 4
      %s31 = int_to_ptr.vmem [resolvable:$true] %s30
      %33 = dma.hbm_to_vmem [thread:$0]  %s0, 16, %s31, [#allocation4]
    $region5: #{tpu_custom_call.1} parent=1 // pred_fallthru
      _
    // Predicated region
    $region6: #{tpu_custom_call.1} parent=1 // pred_check
      _
    $region7: #{tpu_custom_call.1} parent=1 // pred_check_branch
      %35 = sbr.rel (0) target = $region9
    $region8: #{tpu_custom_call.1} parent=1 // pred_region
      _
    $region9: #{tpu_custom_call.1} parent=1 // pred_fallthru
      _
    // Predicated region
    $region10: #{tpu_custom_call.1} parent=1 // pred_check
      _
    $region11: #{tpu_custom_call.1} parent=1 // pred_check_branch
      %37 = sbr.rel (0) target = $region13
    $region12: #{tpu_custom_call.1} parent=1 // pred_region
      _
    $region13: #{tpu_custom_call.1} parent=1 // pred_fallthru
      _
    // Predicated region
    $region14: #{tpu_custom_call.1} parent=1 // pred_check
      _
    $region15: #{tpu_custom_call.1} parent=1 // pred_check_branch
      %39 = sbr.rel (0) target = $region17
    $region16: #{tpu_custom_call.1} parent=1 // pred_region
      %s41 = ssub.s32 16, 16
      %42 = vsyncadd [#allocation7], %s41
      %s44 = sshll.u32 [#allocation6], 4
      %s45 = int_to_ptr.vmem [resolvable:$true] %s44
      %47 = dma.hbm_to_vmem [thread:$0]  %s3, 16, %s45, [#allocation7]
    $region17: #{tpu_custom_call.1} parent=1 // pred_fallthru
      _
    // Predicated region
    $region18: #{tpu_custom_call.1} parent=1 // pred_check
      _
    $region19: #{tpu_custom_call.1} parent=1 // pred_check_branch
      %49 = sbr.rel (0) target = $region21
    $region20: #{tpu_custom_call.1} parent=1 // pred_region
      %s51 = ssub.s32 1024, 1024
      %52 = vsyncadd [#allocation7], %s51
      %s53 = sshll.u32 [#allocation8], 4
      %s54 = int_to_ptr.vmem [resolvable:$true] %s53
      %59 = dma.hbm_to_vmem [thread:$0]  %s4, 1024, %s54, [#allocation7], 64, 64, 4
    $region21: #{tpu_custom_call.1} parent=1 // pred_fallthru
      _
    // Predicated region
    $region22: #{tpu_custom_call.1} parent=1 // pred_check
      _
    $region23: #{tpu_custom_call.1} parent=1 // pred_check_branch
      %61 = sbr.rel (0) target = $region25
    $region24: #{tpu_custom_call.1} parent=1 // pred_region
      %s63 = ssub.s32 16, 16
      %64 = vsyncadd [#allocation10], %s63
      %s66 = sshll.u32 [#allocation9], 4
      %s67 = int_to_ptr.vmem [resolvable:$true] %s66
      %69 = dma.hbm_to_vmem [thread:$0]  %s5, 16, %s67, [#allocation10]
    $region25: #{tpu_custom_call.1} parent=1 // pred_fallthru
      _
    // Predicated region
    $region26: #{tpu_custom_call.1} parent=1 // pred_check
      _
    $region27: #{tpu_custom_call.1} parent=1 // pred_check_branch
      %71 = sbr.rel (0) target = $region29
    $region28: #{tpu_custom_call.1} parent=1 // pred_region
      %s73 = ssub.s32 1024, 1024
      %74 = vsyncadd [#allocation10], %s73
      %s75 = sshll.u32 [#allocation11], 4
      %s76 = int_to_ptr.vmem [resolvable:$true] %s75
      %81 = dma.hbm_to_vmem [thread:$0]  %s6, 1024, %s76, [#allocation10], 64, 64, 4
    $region29: #{tpu_custom_call.1} parent=1 // pred_fallthru
      _
    // Predicated region
    $region30: #{tpu_custom_call.1} parent=1 // pred_check
      _
    $region31: #{tpu_custom_call.1} parent=1 // pred_check_branch
      %83 = sbr.rel (0) target = $region33
    $region32: #{tpu_custom_call.1} parent=1 // pred_region
      _
    $region33: #{tpu_custom_call.1} parent=1 // pred_fallthru
      _
    // Predicated region
    $region34: #{tpu_custom_call.1} parent=1 // pred_check
      _
    $region35: #{tpu_custom_call.1} parent=1 // pred_check_branch
      %85 = sbr.rel (0) target = $region37
    $region36: #{tpu_custom_call.1} parent=1 // pred_region
      %s87 = ssub.s32 8192, 8192
      %88 = vsyncadd [#allocation13], %s87
      %s89 = sshll.u32 [#allocation12], 4
      %s90 = int_to_ptr.vmem [resolvable:$true] %s89
      %95 = dma.hbm_to_vmem [thread:$0]  %s8, 8192, %s90, [#allocation13], 512, 512, 32
    $region37: #{tpu_custom_call.1} parent=1 // pred_fallthru
      _
    // Predicated region
    $region38: #{tpu_custom_call.1} parent=1 // pred_check
      _
    $region39: #{tpu_custom_call.1} parent=1 // pred_check_branch
      %97 = sbr.rel (0) target = $region41
    $region40: #{tpu_custom_call.1} parent=1 // pred_region
      _
    $region41: #{tpu_custom_call.1} parent=1 // pred_fallthru
      _
    // Predicated region
    $region42: #{tpu_custom_call.1} parent=1 // pred_check
      _
    $region43: #{tpu_custom_call.1} parent=1 // pred_check_branch
      %99 = sbr.rel (0) target = $region45
    $region44: #{tpu_custom_call.1} parent=1 // pred_region
      _
    $region45: #{tpu_custom_call.1} parent=1 // pred_fallthru
      _
    // Predicated region
    $region46: #{tpu_custom_call.1} parent=1 // pred_check
      _
    $region47: #{tpu_custom_call.1} parent=1 // pred_check_branch
      %101 = sbr.rel (0) target = $region49
    $region48: #{tpu_custom_call.1} parent=1 // pred_region
      _
    $region49: #{tpu_custom_call.1} parent=1 // pred_fallthru
      _
    // Predicated region
    $region50: #{tpu_custom_call.1} parent=1 // pred_check
      _
    $region51: #{tpu_custom_call.1} parent=1 // pred_check_branch
      %103 = sbr.rel (0) target = $region53
    $region52: #{tpu_custom_call.1} parent=1 // pred_region
      %104 = dma.done [#allocation4], 16
    $region53: #{tpu_custom_call.1} parent=1 // pred_fallthru
      _
    // Predicated region
    $region54: #{tpu_custom_call.1} parent=1 // pred_check
      _
    $region55: #{tpu_custom_call.1} parent=1 // pred_check_branch
      %106 = sbr.rel (0) target = $region57
    $region56: #{tpu_custom_call.1} parent=1 // pred_region
      %107 = dma.done [#allocation7], 16
    $region57: #{tpu_custom_call.1} parent=1 // pred_fallthru
      _
    // Predicated region
    $region58: #{tpu_custom_call.1} parent=1 // pred_check
      _
    $region59: #{tpu_custom_call.1} parent=1 // pred_check_branch
      %109 = sbr.rel (0) target = $region61
    $region60: #{tpu_custom_call.1} parent=1 // pred_region
      %110 = dma.done [#allocation7], 1024
    $region61: #{tpu_custom_call.1} parent=1 // pred_fallthru
      _
    // Predicated region
    $region62: #{tpu_custom_call.1} parent=1 // pred_check
      _
    $region63: #{tpu_custom_call.1} parent=1 // pred_check_branch
      %112 = sbr.rel (0) target = $region65
    $region64: #{tpu_custom_call.1} parent=1 // pred_region
      %113 = dma.done [#allocation10], 16
    $region65: #{tpu_custom_call.1} parent=1 // pred_fallthru
      _
    // Predicated region
    $region66: #{tpu_custom_call.1} parent=1 // pred_check
      _
    $region67: #{tpu_custom_call.1} parent=1 // pred_check_branch
      %115 = sbr.rel (0) target = $region69
    $region68: #{tpu_custom_call.1} parent=1 // pred_region
      %116 = dma.done [#allocation10], 1024
    $region69: #{tpu_custom_call.1} parent=1 // pred_fallthru
      _
    // Predicated region
    $region70: #{tpu_custom_call.1} parent=1 // pred_check
      _
    $region71: #{tpu_custom_call.1} parent=1 // pred_check_branch
      %118 = sbr.rel (0) target = $region73
    $region72: #{tpu_custom_call.1} parent=1 // pred_region
      %119 = dma.done [#allocation13], 8192
    $region73: #{tpu_custom_call.1} parent=1 // pred_fallthru
      _
    %v121 = vld [vmem:[#allocation3] sm:$0x1]
    %v122 = vpack.c.bf16 %v121, %v121
    %v123 = vld [vmem:[%s2] sm:$0xf]
    %v124 = vld [vmem:[%s2 + $0x4] sm:$0xf]
    %v125 = vld [vmem:[#allocation6] sm:$0x1]
    %v128 = vunpack.c.l.b16 %v123
    %v129 = vunpack.c.l.b16 %v124
    %v130 = vpack.c.b16 %v129, %v128
    %vm132 = vcmask 130048
    %v134 = vsel %vm132, %v122, 0
    %136 = vmatprep.subr.bf16.mxu0 0
    %137 = vmatpush1.bf16.msra.mxu0 %v130
    %138 = vmatprep.subr.bf16.mxu0 0
    %139 = vmatpush1.bf16.msra.mxu0 0
    %140 = vmatprep.subr.bf16.mxu0 0
    %141 = vmatpush1.bf16.msra.mxu0 0
    %142 = vmatprep.subr.bf16.mxu0 0
    %143 = vmatpush1.bf16.msra.mxu0 0
    %144 = vmatprep.subr.bf16.mxu0 0
    %145 = vmatpush1.bf16.msra.mxu0 0
    %146 = vmatprep.subr.bf16.mxu0 0
    %147 = vmatpush1.bf16.msra.mxu0 0
    %148 = vmatprep.subr.bf16.mxu0 0
    %149 = vmatpush1.bf16.msra.mxu0 0
    %150 = vmatprep.subr.bf16.mxu0 0
    %151 = vmatpush1.bf16.msra.mxu0 0
    %152 = vmatprep.subr.bf16.mxu0 0
    %153 = vmatpush1.bf16.msra.mxu0 0
    %154 = vmatprep.subr.bf16.mxu0 0
    %155 = vmatpush1.bf16.msra.mxu0 0
    %156 = vmatprep.subr.bf16.mxu0 0
    %157 = vmatpush1.bf16.msra.mxu0 0
    %158 = vmatprep.subr.bf16.mxu0 0
    %159 = vmatpush1.bf16.msra.mxu0 0
    %160 = vmatprep.subr.bf16.mxu0 0
    %161 = vmatpush1.bf16.msra.mxu0 0
    %162 = vmatprep.subr.bf16.mxu0 0
    %163 = vmatpush1.bf16.msra.mxu0 0
    %164 = vmatprep.subr.bf16.mxu0 0
    %165 = vmatpush1.bf16.msra.mxu0 0
    %166 = vmatprep.subr.bf16.mxu0 0
    %167 = vmatpush1.bf16.msra.mxu0 0
    %168 = vmatprep.mubr.bf16.mxu0 0
    %169 = vmatmul.mubr.bf16.gmra.mrb[0].mxu0 %v134
    %v170 = vpop.f32.mrb[0].mxu0
    %v171 = vadd.f32 %v125, %v170
    %v172 = vpop.f32.mrb[0].mxu0
    %v173 = vpop.f32.mrb[0].mxu0
    %v174 = vpop.f32.mrb[0].mxu0
    %175 = vdwg.mxu0
    %vm176 = vcmp.gt.f32.partialorder %v171, 0.0
    %v177 = vmul.f32 %v171, 0.01
    %v178 = vsel %vm176, %v171, %v177
    %v179 = vpack.c.bf16 %v178, %v178
    %v180 = vld [vmem:[#allocation8] sm:$0xf]
    %v181 = vld [vmem:[#allocation8 + $0x4] sm:$0xf]
    %v182 = vld [vmem:[#allocation8 + $0x8] sm:$0xf]
    %v183 = vld [vmem:[#allocation8 + $0xc] sm:$0xf]
    %v184 = vld [vmem:[#allocation8 + $0x10] sm:$0xf]
    %v185 = vld [vmem:[#allocation8 + $0x14] sm:$0xf]
    %v186 = vld [vmem:[#allocation8 + $0x18] sm:$0xf]
    %v187 = vld [vmem:[#allocation8 + $0x1c] sm:$0xf]
    %v188 = vld [vmem:[#allocation8 + $0x20] sm:$0xf]
    %v189 = vld [vmem:[#allocation8 + $0x24] sm:$0xf]
    %v190 = vld [vmem:[#allocation8 + $0x28] sm:$0xf]
    %v191 = vld [vmem:[#allocation8 + $0x2c] sm:$0xf]
    %v192 = vld [vmem:[#allocation8 + $0x30] sm:$0xf]
    %v193 = vld [vmem:[#allocation8 + $0x34] sm:$0xf]
    %v194 = vld [vmem:[#allocation8 + $0x38] sm:$0xf]
    %v195 = vld [vmem:[#allocation8 + $0x3c] sm:$0xf]
    %v196 = vld [vmem:[#allocation9] sm:$0x1]
    %v213 = vunpack.c.l.b16 %v180
    %v214 = vunpack.c.l.b16 %v181
    %v215 = vunpack.c.l.b16 %v182
    %v216 = vunpack.c.l.b16 %v183
    %v217 = vunpack.c.l.b16 %v184
    %v218 = vunpack.c.l.b16 %v185
    %v219 = vunpack.c.l.b16 %v186
    %v220 = vunpack.c.l.b16 %v187
    %v221 = vunpack.c.l.b16 %v188
    %v222 = vunpack.c.l.b16 %v189
    %v223 = vunpack.c.l.b16 %v190
    %v224 = vunpack.c.l.b16 %v191
    %v225 = vunpack.c.l.b16 %v192
    %v226 = vunpack.c.l.b16 %v193
    %v227 = vunpack.c.l.b16 %v194
    %v228 = vunpack.c.l.b16 %v195
    %v229 = vpack.c.b16 %v214, %v213
    %v230 = vpack.c.b16 %v216, %v215
    %v231 = vpack.c.b16 %v218, %v217
    %v232 = vpack.c.b16 %v220, %v219
    %v233 = vpack.c.b16 %v222, %v221
    %v234 = vpack.c.b16 %v224, %v223
    %v235 = vpack.c.b16 %v226, %v225
    %v236 = vpack.c.b16 %v228, %v227
    %245 = vmatprep.subr.bf16.mxu0 0
    %246 = vmatpush1.bf16.msra.mxu0 %v229
    %247 = vmatprep.subr.bf16.mxu0 0
    %248 = vmatpush1.bf16.msra.mxu0 %v230
    %249 = vmatprep.subr.bf16.mxu0 0
    %250 = vmatpush1.bf16.msra.mxu0 %v231
    %251 = vmatprep.subr.bf16.mxu0 0
    %252 = vmatpush1.bf16.msra.mxu0 %v232
    %253 = vmatprep.subr.bf16.mxu0 0
    %254 = vmatpush1.bf16.msra.mxu0 %v233
    %255 = vmatprep.subr.bf16.mxu0 0
    %256 = vmatpush1.bf16.msra.mxu0 %v234
    %257 = vmatprep.subr.bf16.mxu0 0
    %258 = vmatpush1.bf16.msra.mxu0 %v235
    %259 = vmatprep.subr.bf16.mxu0 0
    %260 = vmatpush1.bf16.msra.mxu0 %v236
    %261 = vmatprep.subr.bf16.mxu0 0
    %262 = vmatpush1.bf16.msra.mxu0 0
    %263 = vmatprep.subr.bf16.mxu0 0
    %264 = vmatpush1.bf16.msra.mxu0 0
    %265 = vmatprep.subr.bf16.mxu0 0
    %266 = vmatpush1.bf16.msra.mxu0 0
    %267 = vmatprep.subr.bf16.mxu0 0
    %268 = vmatpush1.bf16.msra.mxu0 0
    %269 = vmatprep.subr.bf16.mxu0 0
    %270 = vmatpush1.bf16.msra.mxu0 0
    %271 = vmatprep.subr.bf16.mxu0 0
    %272 = vmatpush1.bf16.msra.mxu0 0
    %273 = vmatprep.subr.bf16.mxu0 0
    %274 = vmatpush1.bf16.msra.mxu0 0
    %275 = vmatprep.subr.bf16.mxu0 0
    %276 = vmatpush1.bf16.msra.mxu0 0
    %277 = vmatprep.mubr.bf16.mxu0 0
    %278 = vmatmul.mubr.bf16.gmra.mrb[0].mxu0 %v179
    %v279 = vpop.f32.mrb[0].mxu0
    %v280 = vadd.f32 %v196, %v279
    %v281 = vpop.f32.mrb[0].mxu0
    %v282 = vpop.f32.mrb[0].mxu0
    %v283 = vpop.f32.mrb[0].mxu0
    %284 = vdwg.mxu0
    %vm285 = vcmp.gt.f32.partialorder %v280, 0.0
    %v286 = vmul.f32 %v280, 0.01
    %v287 = vsel %vm285, %v280, %v286
    %v288 = vpack.c.bf16 %v287, %v287
    %v289 = vld [vmem:[#allocation11] sm:$0xf]
    %v290 = vld [vmem:[#allocation11 + $0x4] sm:$0xf]
    %v291 = vld [vmem:[#allocation11 + $0x8] sm:$0xf]
    %v292 = vld [vmem:[#allocation11 + $0xc] sm:$0xf]
    %v293 = vld [vmem:[#allocation11 + $0x10] sm:$0xf]
    %v294 = vld [vmem:[#allocation11 + $0x14] sm:$0xf]
    %v295 = vld [vmem:[#allocation11 + $0x18] sm:$0xf]
    %v296 = vld [vmem:[#allocation11 + $0x1c] sm:$0xf]
    %v297 = vld [vmem:[#allocation11 + $0x20] sm:$0xf]
    %v298 = vld [vmem:[#allocation11 + $0x24] sm:$0xf]
    %v299 = vld [vmem:[#allocation11 + $0x28] sm:$0xf]
    %v300 = vld [vmem:[#allocation11 + $0x2c] sm:$0xf]
    %v301 = vld [vmem:[#allocation11 + $0x30] sm:$0xf]
    %v302 = vld [vmem:[#allocation11 + $0x34] sm:$0xf]
    %v303 = vld [vmem:[#allocation11 + $0x38] sm:$0xf]
    %v304 = vld [vmem:[#allocation11 + $0x3c] sm:$0xf]
    %v305 = vld [vmem:[%s7] sm:$0x1]
    %v322 = vunpack.c.l.b16 %v289
    %v323 = vunpack.c.l.b16 %v290
    %v324 = vunpack.c.l.b16 %v291
    %v325 = vunpack.c.l.b16 %v292
    %v326 = vunpack.c.l.b16 %v293
    %v327 = vunpack.c.l.b16 %v294
    %v328 = vunpack.c.l.b16 %v295
    %v329 = vunpack.c.l.b16 %v296
    %v330 = vunpack.c.l.b16 %v297
    %v331 = vunpack.c.l.b16 %v298
    %v332 = vunpack.c.l.b16 %v299
    %v333 = vunpack.c.l.b16 %v300
    %v334 = vunpack.c.l.b16 %v301
    %v335 = vunpack.c.l.b16 %v302
    %v336 = vunpack.c.l.b16 %v303
    %v337 = vunpack.c.l.b16 %v304
    %v338 = vpack.c.b16 %v323, %v322
    %v339 = vpack.c.b16 %v325, %v324
    %v340 = vpack.c.b16 %v327, %v326
    %v341 = vpack.c.b16 %v329, %v328
    %v342 = vpack.c.b16 %v331, %v330
    %v343 = vpack.c.b16 %v333, %v332
    %v344 = vpack.c.b16 %v335, %v334
    %v345 = vpack.c.b16 %v337, %v336
    %354 = vmatprep.subr.bf16.mxu0 0
    %355 = vmatpush1.bf16.msra.mxu0 %v338
    %356 = vmatprep.subr.bf16.mxu0 0
    %357 = vmatpush1.bf16.msra.mxu0 %v339
    %358 = vmatprep.subr.bf16.mxu0 0
    %359 = vmatpush1.bf16.msra.mxu0 %v340
    %360 = vmatprep.subr.bf16.mxu0 0
    %361 = vmatpush1.bf16.msra.mxu0 %v341
    %362 = vmatprep.subr.bf16.mxu0 0
    %363 = vmatpush1.bf16.msra.mxu0 %v342
    %364 = vmatprep.subr.bf16.mxu0 0
    %365 = vmatpush1.bf16.msra.mxu0 %v343
    %366 = vmatprep.subr.bf16.mxu0 0
    %367 = vmatpush1.bf16.msra.mxu0 %v344
    %368 = vmatprep.subr.bf16.mxu0 0
    %369 = vmatpush1.bf16.msra.mxu0 %v345
    %370 = vmatprep.subr.bf16.mxu0 0
    %371 = vmatpush1.bf16.msra.mxu0 0
    %372 = vmatprep.subr.bf16.mxu0 0
    %373 = vmatpush1.bf16.msra.mxu0 0
    %374 = vmatprep.subr.bf16.mxu0 0
    %375 = vmatpush1.bf16.msra.mxu0 0
    %376 = vmatprep.subr.bf16.mxu0 0
    %377 = vmatpush1.bf16.msra.mxu0 0
    %378 = vmatprep.subr.bf16.mxu0 0
    %379 = vmatpush1.bf16.msra.mxu0 0
    %380 = vmatprep.subr.bf16.mxu0 0
    %381 = vmatpush1.bf16.msra.mxu0 0
    %382 = vmatprep.subr.bf16.mxu0 0
    %383 = vmatpush1.bf16.msra.mxu0 0
    %384 = vmatprep.subr.bf16.mxu0 0
    %385 = vmatpush1.bf16.msra.mxu0 0
    %386 = vmatprep.mubr.bf16.mxu0 0
    %387 = vmatmul.mubr.bf16.gmra.mrb[0].mxu0 %v288
    %v388 = vpop.f32.mrb[0].mxu0
    %v389 = vadd.f32 %v305, %v388
    %v390 = vpop.f32.mrb[0].mxu0
    %v391 = vpop.f32.mrb[0].mxu0
    %v392 = vpop.f32.mrb[0].mxu0
    %393 = vdwg.mxu0
    %vm394 = vcmp.gt.f32.partialorder %v389, 0.0
    %v395 = vmul.f32 %v389, 0.01
    %v396 = vsel %vm394, %v389, %v395
    %v397 = vld [vmem:[%s1] sm:$0x3]
    %v398 = vlaneseq
    %v399 = vshrl.u32 %v398, 7
    %v400 = vsub.s32 0, %v399
    %v401 = vrot.slane %v396, %v400
    %v402 = vadd.f32 %v401, %v397
    %v403 = vpack.c.bf16 %v402, %v402
    %v404 = vld [vmem:[#allocation12] sm:$0xff]
    %v405 = vld [vmem:[#allocation12 + $0x8] sm:$0xff]
    %v406 = vld [vmem:[#allocation12 + $0x10] sm:$0xff]
    %v407 = vld [vmem:[#allocation12 + $0x18] sm:$0xff]
    %v408 = vld [vmem:[#allocation12 + $0x20] sm:$0xff]
    %v409 = vld [vmem:[#allocation12 + $0x28] sm:$0xff]
    %v410 = vld [vmem:[#allocation12 + $0x30] sm:$0xff]
    %v411 = vld [vmem:[#allocation12 + $0x38] sm:$0xff]
    %v412 = vld [vmem:[#allocation12 + $0x40] sm:$0xff]
    %v413 = vld [vmem:[#allocation12 + $0x48] sm:$0xff]
    %v414 = vld [vmem:[#allocation12 + $0x50] sm:$0xff]
    %v415 = vld [vmem:[#allocation12 + $0x58] sm:$0xff]
    %v416 = vld [vmem:[#allocation12 + $0x60] sm:$0xff]
    %v417 = vld [vmem:[#allocation12 + $0x68] sm:$0xff]
    %v418 = vld [vmem:[#allocation12 + $0x70] sm:$0xff]
    %v419 = vld [vmem:[#allocation12 + $0x78] sm:$0xff]
    %v420 = vld [vmem:[#allocation12 + $0x80] sm:$0xff]
    %v421 = vld [vmem:[#allocation12 + $0x88] sm:$0xff]
    %v422 = vld [vmem:[#allocation12 + $0x90] sm:$0xff]
    %v423 = vld [vmem:[#allocation12 + $0x98] sm:$0xff]
    %v424 = vld [vmem:[#allocation12 + $0xa0] sm:$0xff]
    %v425 = vld [vmem:[#allocation12 + $0xa8] sm:$0xff]
    %v426 = vld [vmem:[#allocation12 + $0xb0] sm:$0xff]
    %v427 = vld [vmem:[#allocation12 + $0xb8] sm:$0xff]
    %v428 = vld [vmem:[#allocation12 + $0xc0] sm:$0xff]
    %v429 = vld [vmem:[#allocation12 + $0xc8] sm:$0xff]
    %v430 = vld [vmem:[#allocation12 + $0xd0] sm:$0xff]
    %v431 = vld [vmem:[#allocation12 + $0xd8] sm:$0xff]
    %v432 = vld [vmem:[#allocation12 + $0xe0] sm:$0xff]
    %v433 = vld [vmem:[#allocation12 + $0xe8] sm:$0xff]
    %v434 = vld [vmem:[#allocation12 + $0xf0] sm:$0xff]
    %v435 = vld [vmem:[#allocation12 + $0xf8] sm:$0xff]
    %v436 = vld [vmem:[#allocation12 + $0x100] sm:$0xff]
    %v437 = vld [vmem:[#allocation12 + $0x108] sm:$0xff]
    %v438 = vld [vmem:[#allocation12 + $0x110] sm:$0xff]
    %v439 = vld [vmem:[#allocation12 + $0x118] sm:$0xff]
    %v440 = vld [vmem:[#allocation12 + $0x120] sm:$0xff]
    %v441 = vld [vmem:[#allocation12 + $0x128] sm:$0xff]
    %v442 = vld [vmem:[#allocation12 + $0x130] sm:$0xff]
    %v443 = vld [vmem:[#allocation12 + $0x138] sm:$0xff]
    %v444 = vld [vmem:[#allocation12 + $0x140] sm:$0xff]
    %v445 = vld [vmem:[#allocation12 + $0x148] sm:$0xff]
    %v446 = vld [vmem:[#allocation12 + $0x150] sm:$0xff]
    %v447 = vld [vmem:[#allocation12 + $0x158] sm:$0xff]
    %v448 = vld [vmem:[#allocation12 + $0x160] sm:$0xff]
    %v449 = vld [vmem:[#allocation12 + $0x168] sm:$0xff]
    %v450 = vld [vmem:[#allocation12 + $0x170] sm:$0xff]
    %v451 = vld [vmem:[#allocation12 + $0x178] sm:$0xff]
    %v452 = vld [vmem:[#allocation12 + $0x180] sm:$0xff]
    %v453 = vld [vmem:[#allocation12 + $0x188] sm:$0xff]
    %v454 = vld [vmem:[#allocation12 + $0x190] sm:$0xff]
    %v455 = vld [vmem:[#allocation12 + $0x198] sm:$0xff]
    %v456 = vld [vmem:[#allocation12 + $0x1a0] sm:$0xff]
    %v457 = vld [vmem:[#allocation12 + $0x1a8] sm:$0xff]
    %v458 = vld [vmem:[#allocation12 + $0x1b0] sm:$0xff]
    %v459 = vld [vmem:[#allocation12 + $0x1b8] sm:$0xff]
    %v460 = vld [vmem:[#allocation12 + $0x1c0] sm:$0xff]
    %v461 = vld [vmem:[#allocation12 + $0x1c8] sm:$0xff]
    %v462 = vld [vmem:[#allocation12 + $0x1d0] sm:$0xff]
    %v463 = vld [vmem:[#allocation12 + $0x1d8] sm:$0xff]
    %v464 = vld [vmem:[#allocation12 + $0x1e0] sm:$0xff]
    %v465 = vld [vmem:[#allocation12 + $0x1e8] sm:$0xff]
    %v466 = vld [vmem:[#allocation12 + $0x1f0] sm:$0xff]
    %v467 = vld [vmem:[#allocation12 + $0x1f8] sm:$0xff]
    %v468 = vld [vmem:[%s9] sm:$0xff]
    %v470 = vlaneseq
    %v471 = vshrl.u32 %v470, 7
    %v472 = vsub.s32 0, %v471
    %v473 = vrot.slane %v468, %v472
    %v474 = vlaneseq
    %v475 = vshrl.u32 %v474, 7
    %v476 = vsub.s32 1, %v475
    %v477 = vrot.slane %v468, %v476
    %v478 = vlaneseq
    %v479 = vshrl.u32 %v478, 7
    %v480 = vsub.s32 2, %v479
    %v481 = vrot.slane %v468, %v480
    %v482 = vlaneseq
    %v483 = vshrl.u32 %v482, 7
    %v484 = vsub.s32 3, %v483
    %v485 = vrot.slane %v468, %v484
    %v486 = vlaneseq
    %v487 = vshrl.u32 %v486, 7
    %v488 = vsub.s32 4, %v487
    %v489 = vrot.slane %v468, %v488
    %v490 = vlaneseq
    %v491 = vshrl.u32 %v490, 7
    %v492 = vsub.s32 5, %v491
    %v493 = vrot.slane %v468, %v492
    %v494 = vlaneseq
    %v495 = vshrl.u32 %v494, 7
    %v496 = vsub.s32 6, %v495
    %v497 = vrot.slane %v468, %v496
    %v498 = vlaneseq
    %v499 = vshrl.u32 %v498, 7
    %v500 = vsub.s32 7, %v499
    %v501 = vrot.slane %v468, %v500
    %v574 = vunpack.c.l.b16 %v404
    %v575 = vunpack.c.h.b16 %v404
    %v576 = vunpack.c.l.b16 %v405
    %v577 = vunpack.c.h.b16 %v405
    %v578 = vunpack.c.l.b16 %v406
    %v579 = vunpack.c.h.b16 %v406
    %v580 = vunpack.c.l.b16 %v407
    %v581 = vunpack.c.h.b16 %v407
    %v582 = vunpack.c.l.b16 %v408
    %v583 = vunpack.c.h.b16 %v408
    %v584 = vunpack.c.l.b16 %v409
    %v585 = vunpack.c.h.b16 %v409
    %v586 = vunpack.c.l.b16 %v410
    %v587 = vunpack.c.h.b16 %v410
    %v588 = vunpack.c.l.b16 %v411
    %v589 = vunpack.c.h.b16 %v411
    %v590 = vunpack.c.l.b16 %v412
    %v591 = vunpack.c.h.b16 %v412
    %v592 = vunpack.c.l.b16 %v413
    %v593 = vunpack.c.h.b16 %v413
    %v594 = vunpack.c.l.b16 %v414
    %v595 = vunpack.c.h.b16 %v414
    %v596 = vunpack.c.l.b16 %v415
    %v597 = vunpack.c.h.b16 %v415
    %v598 = vunpack.c.l.b16 %v416
    %v599 = vunpack.c.h.b16 %v416
    %v600 = vunpack.c.l.b16 %v417
    %v601 = vunpack.c.h.b16 %v417
    %v602 = vunpack.c.l.b16 %v418
    %v603 = vunpack.c.h.b16 %v418
    %v604 = vunpack.c.l.b16 %v419
    %v605 = vunpack.c.h.b16 %v419
    %v606 = vunpack.c.l.b16 %v420
    %v607 = vunpack.c.h.b16 %v420
    %v608 = vunpack.c.l.b16 %v421
    %v609 = vunpack.c.h.b16 %v421
    %v610 = vunpack.c.l.b16 %v422
    %v611 = vunpack.c.h.b16 %v422
    %v612 = vunpack.c.l.b16 %v423
    %v613 = vunpack.c.h.b16 %v423
    %v614 = vunpack.c.l.b16 %v424
    %v615 = vunpack.c.h.b16 %v424
    %v616 = vunpack.c.l.b16 %v425
    %v617 = vunpack.c.h.b16 %v425
    %v618 = vunpack.c.l.b16 %v426
    %v619 = vunpack.c.h.b16 %v426
    %v620 = vunpack.c.l.b16 %v427
    %v621 = vunpack.c.h.b16 %v427
    %v622 = vunpack.c.l.b16 %v428
    %v623 = vunpack.c.h.b16 %v428
    %v624 = vunpack.c.l.b16 %v429
    %v625 = vunpack.c.h.b16 %v429
    %v626 = vunpack.c.l.b16 %v430
    %v627 = vunpack.c.h.b16 %v430
    %v628 = vunpack.c.l.b16 %v431
    %v629 = vunpack.c.h.b16 %v431
    %v630 = vunpack.c.l.b16 %v432
    %v631 = vunpack.c.h.b16 %v432
    %v632 = vunpack.c.l.b16 %v433
    %v633 = vunpack.c.h.b16 %v433
    %v634 = vunpack.c.l.b16 %v434
    %v635 = vunpack.c.h.b16 %v434
    %v636 = vunpack.c.l.b16 %v435
    %v637 = vunpack.c.h.b16 %v435
    %v638 = vunpack.c.l.b16 %v436
    %v639 = vunpack.c.h.b16 %v436
    %v640 = vunpack.c.l.b16 %v437
    %v641 = vunpack.c.h.b16 %v437
    %v642 = vunpack.c.l.b16 %v438
    %v643 = vunpack.c.h.b16 %v438
    %v644 = vunpack.c.l.b16 %v439
    %v645 = vunpack.c.h.b16 %v439
    %v646 = vunpack.c.l.b16 %v440
    %v647 = vunpack.c.h.b16 %v440
    %v648 = vunpack.c.l.b16 %v441
    %v649 = vunpack.c.h.b16 %v441
    %v650 = vunpack.c.l.b16 %v442
    %v651 = vunpack.c.h.b16 %v442
    %v652 = vunpack.c.l.b16 %v443
    %v653 = vunpack.c.h.b16 %v443
    %v654 = vunpack.c.l.b16 %v444
    %v655 = vunpack.c.h.b16 %v444
    %v656 = vunpack.c.l.b16 %v445
    %v657 = vunpack.c.h.b16 %v445
    %v658 = vunpack.c.l.b16 %v446
    %v659 = vunpack.c.h.b16 %v446
    %v660 = vunpack.c.l.b16 %v447
    %v661 = vunpack.c.h.b16 %v447
    %v662 = vunpack.c.l.b16 %v448
    %v663 = vunpack.c.h.b16 %v448
    %v664 = vunpack.c.l.b16 %v449
    %v665 = vunpack.c.h.b16 %v449
    %v666 = vunpack.c.l.b16 %v450
    %v667 = vunpack.c.h.b16 %v450
    %v668 = vunpack.c.l.b16 %v451
    %v669 = vunpack.c.h.b16 %v451
    %v670 = vunpack.c.l.b16 %v452
    %v671 = vunpack.c.h.b16 %v452
    %v672 = vunpack.c.l.b16 %v453
    %v673 = vunpack.c.h.b16 %v453
    %v674 = vunpack.c.l.b16 %v454
    %v675 = vunpack.c.h.b16 %v454
    %v676 = vunpack.c.l.b16 %v455
    %v677 = vunpack.c.h.b16 %v455
    %v678 = vunpack.c.l.b16 %v456
    %v679 = vunpack.c.h.b16 %v456
    %v680 = vunpack.c.l.b16 %v457
    %v681 = vunpack.c.h.b16 %v457
    %v682 = vunpack.c.l.b16 %v458
    %v683 = vunpack.c.h.b16 %v458
    %v684 = vunpack.c.l.b16 %v459
    %v685 = vunpack.c.h.b16 %v459
    %v686 = vunpack.c.l.b16 %v460
    %v687 = vunpack.c.h.b16 %v460
    %v688 = vunpack.c.l.b16 %v461
    %v689 = vunpack.c.h.b16 %v461
    %v690 = vunpack.c.l.b16 %v462
    %v691 = vunpack.c.h.b16 %v462
    %v692 = vunpack.c.l.b16 %v463
    %v693 = vunpack.c.h.b16 %v463
    %v694 = vunpack.c.l.b16 %v464
    %v695 = vunpack.c.h.b16 %v464
    %v696 = vunpack.c.l.b16 %v465
    %v697 = vunpack.c.h.b16 %v465
    %v698 = vunpack.c.l.b16 %v466
    %v699 = vunpack.c.h.b16 %v466
    %v700 = vunpack.c.l.b16 %v467
    %v701 = vunpack.c.h.b16 %v467
    %v702 = vpack.c.b16 %v582, %v574
    %v703 = vpack.c.b16 %v583, %v575
    %v704 = vpack.c.b16 %v584, %v576
    %v705 = vpack.c.b16 %v585, %v577
    %v706 = vpack.c.b16 %v586, %v578
    %v707 = vpack.c.b16 %v587, %v579
    %v708 = vpack.c.b16 %v588, %v580
    %v709 = vpack.c.b16 %v589, %v581
    %v710 = vpack.c.b16 %v598, %v590
    %v711 = vpack.c.b16 %v599, %v591
    %v712 = vpack.c.b16 %v600, %v592
    %v713 = vpack.c.b16 %v601, %v593
    %v714 = vpack.c.b16 %v602, %v594
    %v715 = vpack.c.b16 %v603, %v595
    %v716 = vpack.c.b16 %v604, %v596
    %v717 = vpack.c.b16 %v605, %v597
    %v718 = vpack.c.b16 %v614, %v606
    %v719 = vpack.c.b16 %v615, %v607
    %v720 = vpack.c.b16 %v616, %v608
    %v721 = vpack.c.b16 %v617, %v609
    %v722 = vpack.c.b16 %v618, %v610
    %v723 = vpack.c.b16 %v619, %v611
    %v724 = vpack.c.b16 %v620, %v612
    %v725 = vpack.c.b16 %v621, %v613
    %v726 = vpack.c.b16 %v630, %v622
    %v727 = vpack.c.b16 %v631, %v623
    %v728 = vpack.c.b16 %v632, %v624
    %v729 = vpack.c.b16 %v633, %v625
    %v730 = vpack.c.b16 %v634, %v626
    %v731 = vpack.c.b16 %v635, %v627
    %v732 = vpack.c.b16 %v636, %v628
    %v733 = vpack.c.b16 %v637, %v629
    %v734 = vpack.c.b16 %v646, %v638
    %v735 = vpack.c.b16 %v647, %v639
    %v736 = vpack.c.b16 %v648, %v640
    %v737 = vpack.c.b16 %v649, %v641
    %v738 = vpack.c.b16 %v650, %v642
    %v739 = vpack.c.b16 %v651, %v643
    %v740 = vpack.c.b16 %v652, %v644
    %v741 = vpack.c.b16 %v653, %v645
    %v742 = vpack.c.b16 %v662, %v654
    %v743 = vpack.c.b16 %v663, %v655
    %v744 = vpack.c.b16 %v664, %v656
    %v745 = vpack.c.b16 %v665, %v657
    %v746 = vpack.c.b16 %v666, %v658
    %v747 = vpack.c.b16 %v667, %v659
    %v748 = vpack.c.b16 %v668, %v660
    %v749 = vpack.c.b16 %v669, %v661
    %v750 = vpack.c.b16 %v678, %v670
    %v751 = vpack.c.b16 %v679, %v671
    %v752 = vpack.c.b16 %v680, %v672
    %v753 = vpack.c.b16 %v681, %v673
    %v754 = vpack.c.b16 %v682, %v674
    %v755 = vpack.c.b16 %v683, %v675
    %v756 = vpack.c.b16 %v684, %v676
    %v757 = vpack.c.b16 %v685, %v677
    %v758 = vpack.c.b16 %v694, %v686
    %v759 = vpack.c.b16 %v695, %v687
    %v760 = vpack.c.b16 %v696, %v688
    %v761 = vpack.c.b16 %v697, %v689
    %v762 = vpack.c.b16 %v698, %v690
    %v763 = vpack.c.b16 %v699, %v691
    %v764 = vpack.c.b16 %v700, %v692
    %v765 = vpack.c.b16 %v701, %v693
    %830 = vmatprep.subr.bf16.mxu0 %v703
    %831 = vmatpush1.bf16.msra.mxu0 %v702
    %832 = vmatprep.subr.bf16.mxu0 %v711
    %833 = vmatpush1.bf16.msra.mxu0 %v710
    %834 = vmatprep.subr.bf16.mxu0 %v719
    %835 = vmatpush1.bf16.msra.mxu0 %v718
    %836 = vmatprep.subr.bf16.mxu0 %v727
    %837 = vmatpush1.bf16.msra.mxu0 %v726
    %838 = vmatprep.subr.bf16.mxu0 %v735
    %839 = vmatpush1.bf16.msra.mxu0 %v734
    %840 = vmatprep.subr.bf16.mxu0 %v743
    %841 = vmatpush1.bf16.msra.mxu0 %v742
    %842 = vmatprep.subr.bf16.mxu0 %v751
    %843 = vmatpush1.bf16.msra.mxu0 %v750
    %844 = vmatprep.subr.bf16.mxu0 %v759
    %845 = vmatpush1.bf16.msra.mxu0 %v758
    %846 = vmatprep.subr.bf16.mxu0 0
    %847 = vmatpush1.bf16.msra.mxu0 0
    %848 = vmatprep.subr.bf16.mxu0 0
    %849 = vmatpush1.bf16.msra.mxu0 0
    %850 = vmatprep.subr.bf16.mxu0 0
    %851 = vmatpush1.bf16.msra.mxu0 0
    %852 = vmatprep.subr.bf16.mxu0 0
    %853 = vmatpush1.bf16.msra.mxu0 0
    %854 = vmatprep.subr.bf16.mxu0 0
    %855 = vmatpush1.bf16.msra.mxu0 0
    %856 = vmatprep.subr.bf16.mxu0 0
    %857 = vmatpush1.bf16.msra.mxu0 0
    %858 = vmatprep.subr.bf16.mxu0 0
    %859 = vmatpush1.bf16.msra.mxu0 0
    %860 = vmatprep.subr.bf16.mxu0 0
    %861 = vmatpush1.bf16.msra.mxu0 0
    %862 = vmatprep.mubr.bf16.mxu0 0
    %863 = vmatmul.mubr.bf16.gmra.mrb[0].mxu0 %v403
    %v864 = vpop.f32.mrb[0].mxu0
    %v865 = vadd.f32 %v473, %v864
    %v866 = vpop.f32.mrb[0].mxu0
    %v867 = vadd.f32 %v477, %v866
    %v868 = vpop.f32.mrb[0].mxu0
    %v869 = vpop.f32.mrb[0].mxu0
    %870 = vdwg.mxu0
    %871 = vmatprep.subr.bf16.mxu0 %v705
    %872 = vmatpush1.bf16.msra.mxu0 %v704
    %873 = vmatprep.subr.bf16.mxu0 %v713
    %874 = vmatpush1.bf16.msra.mxu0 %v712
    %875 = vmatprep.subr.bf16.mxu0 %v721
    %876 = vmatpush1.bf16.msra.mxu0 %v720
    %877 = vmatprep.subr.bf16.mxu0 %v729
    %878 = vmatpush1.bf16.msra.mxu0 %v728
    %879 = vmatprep.subr.bf16.mxu0 %v737
    %880 = vmatpush1.bf16.msra.mxu0 %v736
    %881 = vmatprep.subr.bf16.mxu0 %v745
    %882 = vmatpush1.bf16.msra.mxu0 %v744
    %883 = vmatprep.subr.bf16.mxu0 %v753
    %884 = vmatpush1.bf16.msra.mxu0 %v752
    %885 = vmatprep.subr.bf16.mxu0 %v761
    %886 = vmatpush1.bf16.msra.mxu0 %v760
    %887 = vmatprep.subr.bf16.mxu0 0
    %888 = vmatpush1.bf16.msra.mxu0 0
    %889 = vmatprep.subr.bf16.mxu0 0
    %890 = vmatpush1.bf16.msra.mxu0 0
    %891 = vmatprep.subr.bf16.mxu0 0
    %892 = vmatpush1.bf16.msra.mxu0 0
    %893 = vmatprep.subr.bf16.mxu0 0
    %894 = vmatpush1.bf16.msra.mxu0 0
    %895 = vmatprep.subr.bf16.mxu0 0
    %896 = vmatpush1.bf16.msra.mxu0 0
    %897 = vmatprep.subr.bf16.mxu0 0
    %898 = vmatpush1.bf16.msra.mxu0 0
    %899 = vmatprep.subr.bf16.mxu0 0
    %900 = vmatpush1.bf16.msra.mxu0 0
    %901 = vmatprep.subr.bf16.mxu0 0
    %902 = vmatpush1.bf16.msra.mxu0 0
    %903 = vmatprep.mubr.bf16.mxu0 0
    %904 = vmatmul.mubr.bf16.gmra.mrb[0].mxu0 %v403
    %v905 = vpop.f32.mrb[0].mxu0
    %v906 = vadd.f32 %v481, %v905
    %v907 = vpop.f32.mrb[0].mxu0
    %v908 = vadd.f32 %v485, %v907
    %v909 = vpop.f32.mrb[0].mxu0
    %v910 = vpop.f32.mrb[0].mxu0
    %911 = vdwg.mxu0
    %912 = vmatprep.subr.bf16.mxu0 %v707
    %913 = vmatpush1.bf16.msra.mxu0 %v706
    %914 = vmatprep.subr.bf16.mxu0 %v715
    %915 = vmatpush1.bf16.msra.mxu0 %v714
    %916 = vmatprep.subr.bf16.mxu0 %v723
    %917 = vmatpush1.bf16.msra.mxu0 %v722
    %918 = vmatprep.subr.bf16.mxu0 %v731
    %919 = vmatpush1.bf16.msra.mxu0 %v730
    %920 = vmatprep.subr.bf16.mxu0 %v739
    %921 = vmatpush1.bf16.msra.mxu0 %v738
    %922 = vmatprep.subr.bf16.mxu0 %v747
    %923 = vmatpush1.bf16.msra.mxu0 %v746
    %924 = vmatprep.subr.bf16.mxu0 %v755
    %925 = vmatpush1.bf16.msra.mxu0 %v754
    %926 = vmatprep.subr.bf16.mxu0 %v763
    %927 = vmatpush1.bf16.msra.mxu0 %v762
    %928 = vmatprep.subr.bf16.mxu0 0
    %929 = vmatpush1.bf16.msra.mxu0 0
    %930 = vmatprep.subr.bf16.mxu0 0
    %931 = vmatpush1.bf16.msra.mxu0 0
    %932 = vmatprep.subr.bf16.mxu0 0
    %933 = vmatpush1.bf16.msra.mxu0 0
    %934 = vmatprep.subr.bf16.mxu0 0
    %935 = vmatpush1.bf16.msra.mxu0 0
    %936 = vmatprep.subr.bf16.mxu0 0
    %937 = vmatpush1.bf16.msra.mxu0 0
    %938 = vmatprep.subr.bf16.mxu0 0
    %939 = vmatpush1.bf16.msra.mxu0 0
    %940 = vmatprep.subr.bf16.mxu0 0
    %941 = vmatpush1.bf16.msra.mxu0 0
    %942 = vmatprep.subr.bf16.mxu0 0
    %943 = vmatpush1.bf16.msra.mxu0 0
    %944 = vmatprep.mubr.bf16.mxu0 0
    %945 = vmatmul.mubr.bf16.gmra.mrb[0].mxu0 %v403
    %v946 = vpop.f32.mrb[0].mxu0
    %v947 = vadd.f32 %v489, %v946
    %v948 = vpop.f32.mrb[0].mxu0
    %v949 = vadd.f32 %v493, %v948
    %v950 = vpop.f32.mrb[0].mxu0
    %v951 = vpop.f32.mrb[0].mxu0
    %952 = vdwg.mxu0
    %953 = vmatprep.subr.bf16.mxu0 %v709
    %954 = vmatpush1.bf16.msra.mxu0 %v708
    %955 = vmatprep.subr.bf16.mxu0 %v717
    %956 = vmatpush1.bf16.msra.mxu0 %v716
    %957 = vmatprep.subr.bf16.mxu0 %v725
    %958 = vmatpush1.bf16.msra.mxu0 %v724
    %959 = vmatprep.subr.bf16.mxu0 %v733
    %960 = vmatpush1.bf16.msra.mxu0 %v732
    %961 = vmatprep.subr.bf16.mxu0 %v741
    %962 = vmatpush1.bf16.msra.mxu0 %v740
    %963 = vmatprep.subr.bf16.mxu0 %v749
    %964 = vmatpush1.bf16.msra.mxu0 %v748
    %965 = vmatprep.subr.bf16.mxu0 %v757
    %966 = vmatpush1.bf16.msra.mxu0 %v756
    %967 = vmatprep.subr.bf16.mxu0 %v765
    %968 = vmatpush1.bf16.msra.mxu0 %v764
    %969 = vmatprep.subr.bf16.mxu0 0
    %970 = vmatpush1.bf16.msra.mxu0 0
    %971 = vmatprep.subr.bf16.mxu0 0
    %972 = vmatpush1.bf16.msra.mxu0 0
    %973 = vmatprep.subr.bf16.mxu0 0
    %974 = vmatpush1.bf16.msra.mxu0 0
    %975 = vmatprep.subr.bf16.mxu0 0
    %976 = vmatpush1.bf16.msra.mxu0 0
    %977 = vmatprep.subr.bf16.mxu0 0
    %978 = vmatpush1.bf16.msra.mxu0 0
    %979 = vmatprep.subr.bf16.mxu0 0
    %980 = vmatpush1.bf16.msra.mxu0 0
    %981 = vmatprep.subr.bf16.mxu0 0
    %982 = vmatpush1.bf16.msra.mxu0 0
    %983 = vmatprep.subr.bf16.mxu0 0
    %984 = vmatpush1.bf16.msra.mxu0 0
    %985 = vmatprep.mubr.bf16.mxu0 0
    %986 = vmatmul.mubr.bf16.gmra.mrb[0].mxu0 %v403
    %v987 = vpop.f32.mrb[0].mxu0
    %v988 = vadd.f32 %v497, %v987
    %v989 = vpop.f32.mrb[0].mxu0
    %v990 = vadd.f32 %v501, %v989
    %v991 = vpop.f32.mrb[0].mxu0
    %v992 = vpop.f32.mrb[0].mxu0
    %993 = vdwg.mxu0
    %vm994 = vcmp.gt.f32.partialorder %v865, 0.0
    %vm995 = vcmp.gt.f32.partialorder %v867, 0.0
    %vm996 = vcmp.gt.f32.partialorder %v906, 0.0
    %vm997 = vcmp.gt.f32.partialorder %v908, 0.0
    %vm998 = vcmp.gt.f32.partialorder %v947, 0.0
    %vm999 = vcmp.gt.f32.partialorder %v949, 0.0
    %vm1000 = vcmp.gt.f32.partialorder %v988, 0.0
    %vm1001 = vcmp.gt.f32.partialorder %v990, 0.0
    %v1002 = vmul.f32 %v865, 0.01
    %v1003 = vmul.f32 %v867, 0.01
    %v1004 = vmul.f32 %v906, 0.01
    %v1005 = vmul.f32 %v908, 0.01
    %v1006 = vmul.f32 %v947, 0.01
    %v1007 = vmul.f32 %v949, 0.01
    %v1008 = vmul.f32 %v988, 0.01
    %v1009 = vmul.f32 %v990, 0.01
    %v1010 = vsel %vm994, %v865, %v1002
    %v1011 = vsel %vm995, %v867, %v1003
    %v1012 = vsel %vm996, %v906, %v1004
    %v1013 = vsel %vm997, %v908, %v1005
    %v1014 = vsel %vm998, %v947, %v1006
    %v1015 = vsel %vm999, %v949, %v1007
    %v1016 = vsel %vm1000, %v988, %v1008
    %v1017 = vsel %vm1001, %v990, %v1009
    %v1018 = vld [vmem:[%s10] sm:$0xff]
    %v1020 = vlaneseq
    %v1021 = vshrl.u32 %v1020, 7
    %v1022 = vsub.s32 0, %v1021
    %v1023 = vrot.slane %v1018, %v1022
    %v1024 = vlaneseq
    %v1025 = vshrl.u32 %v1024, 7
    %v1026 = vsub.s32 1, %v1025
    %v1027 = vrot.slane %v1018, %v1026
    %v1028 = vlaneseq
    %v1029 = vshrl.u32 %v1028, 7
    %v1030 = vsub.s32 2, %v1029
    %v1031 = vrot.slane %v1018, %v1030
    %v1032 = vlaneseq
    %v1033 = vshrl.u32 %v1032, 7
    %v1034 = vsub.s32 3, %v1033
    %v1035 = vrot.slane %v1018, %v1034
    %v1036 = vlaneseq
    %v1037 = vshrl.u32 %v1036, 7
    %v1038 = vsub.s32 4, %v1037
    %v1039 = vrot.slane %v1018, %v1038
    %v1040 = vlaneseq
    %v1041 = vshrl.u32 %v1040, 7
    %v1042 = vsub.s32 5, %v1041
    %v1043 = vrot.slane %v1018, %v1042
    %v1044 = vlaneseq
    %v1045 = vshrl.u32 %v1044, 7
    %v1046 = vsub.s32 6, %v1045
    %v1047 = vrot.slane %v1018, %v1046
    %v1048 = vlaneseq
    %v1049 = vshrl.u32 %v1048, 7
    %v1050 = vsub.s32 7, %v1049
    %v1051 = vrot.slane %v1018, %v1050
    %v1060 = vmul.f32 %v1010, %v1023
    %v1061 = vmul.f32 %v1011, %v1027
    %v1062 = vmul.f32 %v1012, %v1031
    %v1063 = vmul.f32 %v1013, %v1035
    %v1064 = vmul.f32 %v1014, %v1039
    %v1065 = vmul.f32 %v1015, %v1043
    %v1066 = vmul.f32 %v1016, %v1047
    %v1067 = vmul.f32 %v1017, %v1051
    %vm1068 = vcmask 1041408
    %v1069 = vsel %vm1068, %v1060, 0.0
    %v1070 = vsel %vm1068, %v1061, 0.0
    %v1071 = vadd.f32 %v1069, %v1070
    %v1072 = vsel %vm1068, %v1062, 0.0
    %v1073 = vadd.f32 %v1071, %v1072
    %v1074 = vsel %vm1068, %v1063, 0.0
    %v1075 = vadd.f32 %v1073, %v1074
    %v1076 = vsel %vm1068, %v1064, 0.0
    %v1077 = vadd.f32 %v1075, %v1076
    %v1078 = vsel %vm1068, %v1065, 0.0
    %v1079 = vadd.f32 %v1077, %v1078
    %v1080 = vsel %vm1068, %v1066, 0.0
    %v1081 = vadd.f32 %v1079, %v1080
    %v1082 = vsel %vm1068, %v1067, 0.0
    %v1083 = vadd.f32 %v1081, %v1082
    %1084 = vadd.xlane.f32.xlu0 %v1083
    %v1085 = vpop.xlane.xlu0 %1084
    %v1086 = vld [vmem:[#allocation2] sm:$0x1]
    %v1088 = vlaneseq
    %v1089 = vshrl.u32 %v1088, 7
    %v1090 = vsub.s32 0, %v1089
    %v1091 = vrot.slane %v1086, %v1090
    %v1093 = vadd.f32 %v1085, %v1091
    %1095 = vset.pattern.permute.xlu0 0
    %1096 = vperm.xlu0 %1095, %v1093
    %v1097 = vpop.permute.xlu0 %1096
    %1099 = vst [vmem:[#allocation14] sm:$0x3] %v1097
    // Predicated region
    $region74: #{tpu_custom_call.1} parent=1 // pred_check
      _
    $region75: #{tpu_custom_call.1} parent=1 // pred_check_branch
      %1101 = sbr.rel (0) target = $region77
    $region76: #{tpu_custom_call.1} parent=1 // pred_region
      %s1103 = ssub.s32 32, 32
      %1104 = vsyncadd [#allocation5], %s1103
      %s1106 = sshll.u32 [#allocation14], 4
      %s1107 = int_to_ptr.vmem [resolvable:$true] %s1106
      %1109 = dma.vmem_to_hbm [thread:$0]  %s1107, 32, %s12, [#allocation5]
    $region77: #{tpu_custom_call.1} parent=1 // pred_fallthru
      _
    // Predicated region
    $region78: #{tpu_custom_call.1} parent=1 // pred_check
      _
    $region79: #{tpu_custom_call.1} parent=1 // pred_check_branch
      %1111 = sbr.rel (0) target = $region81
    $region80: #{tpu_custom_call.1} parent=1 // pred_region
      %1112 = dma.done [#allocation5], 32
    $region81: #{tpu_custom_call.1} parent=1 // pred_fallthru
      _
    %1113 = vsyncpa [#allocation4], 1
    %1114 = vsyncpa [#allocation7], 1
    %1115 = vsyncpa [#allocation10], 1
    %1116 = vsyncpa [#allocation13], 1
    %1117 = vsyncpa [#allocation5], 1

</llo_original>
